<compile_context>
chip_gen: v7x
topology: tpu7x:2x2x1
jax: 0.10.0
libtpu: 0.0.40
codegen_flags: <defaults>
</compile_context>

<pallas_src>
import jax
import jax.numpy as jnp
from jax import lax
from jax.experimental import pallas as pl
from jax.experimental.pallas import tpu as pltpu

_NEG = -1e30  # finite "minus infinity": NaN-safe even for fully-padded rows


def _round_up(n, m):
    return ((n + m - 1) // m) * m


def _cdiv(a, b):
    return (a + b - 1) // b


def _seq_attn_kernel(wt_ref, b_ref, x_ref, y_ref, m_ref, o_ref, yproj_ref):
    l1 = pl.program_id(1)
    BB, TL1, Hp = x_ref.shape
    _, L2p, _ = y_ref.shape

    wt = wt_ref[...]                       # (Hp, Hp) bf16, pre-transposed (in, out)
    b = b_ref[...]                         # (1, Hp)  f32

    # y projection: once per batch block, cached in VMEM scratch across L1 tiles.
    @pl.when(l1 == 0)
    def _():
        y2 = y_ref[...].reshape(BB * L2p, Hp)
        yp = jnp.maximum(
            jnp.dot(y2, wt, preferred_element_type=jnp.float32) + b, 0.0)
        yproj_ref[...] = yp.astype(jnp.bfloat16).reshape(BB, L2p, Hp)

    # x projection for this L1 tile as one MXU-shaped (BB*TL1, Hp) matmul.
    x2 = x_ref[...].reshape(BB * TL1, Hp)
    xp = jnp.maximum(
        jnp.dot(x2, wt, preferred_element_type=jnp.float32) + b, 0.0)
    xp = xp.astype(jnp.bfloat16).reshape(BB, TL1, Hp)

    # Batched NT contraction on the MXU (no transpose): (BB, TL1, L2p) f32.
    scores = lax.dot_general(
        xp, yproj_ref[...],
        dimension_numbers=(((2,), (2,)), ((0,), (0,))),
        preferred_element_type=jnp.float32)
    scores = scores + m_ref[...]           # additive mask, broadcasts over TL1

    # Softmax over L2 in f32 (exp + approx reciprocal go to the EUP).
    row_max = jnp.max(scores, axis=-1, keepdims=True)
    p = jnp.exp(scores - row_max)
    alpha = p * pl.reciprocal(jnp.sum(p, axis=-1, keepdims=True), approx=True)

    # Weighted sum of the ORIGINAL y: (BB, TL1, L2p) @ (BB, L2p, Hp).
    out = lax.dot_general(
        alpha.astype(jnp.bfloat16), y_ref[...],
        dimension_numbers=(((2,), (1,)), ((0,), (0,))),
        preferred_element_type=jnp.float32)
    o_ref[...] = out.astype(o_ref.dtype)


def _pad_cast(a, shape, dtype):
    """Pad with zeros to `shape` and cast; plain astype when already aligned."""
    if tuple(a.shape) == tuple(shape):
        return a.astype(dtype)
    buf = jnp.zeros(shape, dtype)
    return buf.at[tuple(slice(0, s) for s in a.shape)].set(a.astype(dtype))


def _vmem_capacity_bytes():
    try:
        return int(pltpu.get_tpu_info().vmem_capacity_bytes)
    except Exception:
        return 64 << 20  # conservative (v7x physical)


def seq_attn_match(x, y, y_mask, w, b, *, batch_block=None,
                   out_dtype=jnp.float32):
    """x: (B,L1,H), y: (B,L2,H), y_mask: (B,L2) {1=pad}, w: (H,H) torch (out,in), b: (H,)."""
    B, L1, H = x.shape
    _, L2, _ = y.shape

    Hp = _round_up(H, 128)     # lane-dense feature dim
    L2p = _round_up(L2, 128)   # lane-dense scores/alpha last dim

    # L1 tile: at most 256 rows, multiple of 16 (bf16 sublane packing), sized to
    # minimize padding waste for the given L1.
    n_l1_tiles = max(1, _cdiv(L1, 256))
    TL1 = _round_up(_cdiv(L1, n_l1_tiles), 16)
    L1p = n_l1_tiles * TL1

    out_itemsize = jnp.dtype(out_dtype).itemsize

    def footprint(bb):
        # double-buffered pipeline blocks
        dbuf = 2 * (bb * TL1 * Hp * 2          # x block (bf16)
                    + bb * L2p * Hp * 2        # y block (bf16)
                    + bb * L2p * 4             # mask block (f32)
                    + bb * TL1 * Hp * out_itemsize)  # out block
        dbuf += 2 * (Hp * Hp * 2 + Hp * 4)     # weight + bias
        scratch = bb * L2p * Hp * 2            # cached y_proj (bf16)
        live = (bb * TL1 * Hp * 4              # x_proj f32
                + bb * L2p * Hp * 4            # y_proj f32 (init step)
                + 2 * bb * TL1 * L2p * 4       # scores + p (f32)
                + bb * TL1 * L2p * 2           # alpha bf16
                + bb * TL1 * Hp * 4)           # out accum f32
        return dbuf + scratch + live

    vmem_cap = _vmem_capacity_bytes()
    budget = int(vmem_cap * 0.45)              # leave headroom for compiler temps

    if batch_block is None:
        BB = max(1, 256 // TL1)                # ~256 projection rows per step
    else:
        BB = max(1, batch_block)
    BB = min(BB, B)
    if B >= 2:
        BB = min(BB, _cdiv(B, 2))              # >= 2 parallel grid points (v7x 2 TCs)
    while BB > 1 and footprint(BB) > budget:
        BB -= 1
    Bp = _round_up(B, BB)

    fp = footprint(BB)
    vmem_limit = int(min(vmem_cap * 0.75, max(32 << 20, 2 * fp)))

    # Pad + cast (zero-padded H/L rows/cols contribute nothing); no-op copies are
    # skipped when the caller's shapes are already tile-aligned.
    x_p = _pad_cast(x, (Bp, L1p, Hp), jnp.bfloat16)
    y_p = _pad_cast(y, (Bp, L2p, Hp), jnp.bfloat16)

    # Additive mask: 0 for valid, -1e30 for padding (threshold > 0, so any
    # positive mask value fully masks); padded L2 columns / batches also masked.
    valid_mask = jnp.where(y_mask > 0, jnp.float32(_NEG), jnp.float32(0.0))
    if (Bp, L2p) == (B, L2):
        addmask = valid_mask[:, None, :]
    else:
        addmask = jnp.full((Bp, 1, L2p), _NEG, jnp.float32)
        addmask = addmask.at[:B, 0, :L2].set(valid_mask)

    # Pre-transposed weight (in, out): kernel does plain x @ wt on the MXU.
    wt = _pad_cast(w.T, (Hp, Hp), jnp.bfloat16)
    b_p = _pad_cast(b.reshape(1, H), (1, Hp), jnp.float32)

    out = pl.pallas_call(
        _seq_attn_kernel,
        out_shape=jax.ShapeDtypeStruct((Bp, L1p, Hp), out_dtype),
        grid_spec=pltpu.PrefetchScalarGridSpec(
            num_scalar_prefetch=0,
            grid=(Bp // BB, L1p // TL1),
            in_specs=[
                pl.BlockSpec((Hp, Hp), lambda i, j: (0, 0)),            # weight^T
                pl.BlockSpec((1, Hp), lambda i, j: (0, 0)),             # bias
                pl.BlockSpec((BB, TL1, Hp), lambda i, j: (i, j, 0)),    # x L1 tile
                pl.BlockSpec((BB, L2p, Hp), lambda i, j: (i, 0, 0)),    # y (resident across L1 tiles)
                pl.BlockSpec((BB, 1, L2p), lambda i, j: (i, 0, 0)),     # additive mask
            ],
            out_specs=pl.BlockSpec((BB, TL1, Hp), lambda i, j: (i, j, 0)),
            scratch_shapes=[pltpu.VMEM((BB, L2p, Hp), jnp.bfloat16)],   # cached y_proj
        ),
        compiler_params=pltpu.CompilerParams(
            dimension_semantics=("parallel", "arbitrary"),
            vmem_limit_bytes=vmem_limit),
    )(wt, b_p, x_p, y_p, addmask)

    return out[:B, :L1, :H]


def _reference_f32(x, y, y_mask, w, b):
    """Exact f32 mirror of the PyTorch forward pass."""
    x_proj = jax.nn.relu(jnp.einsum("blh,oh->blo", x, w) + b)
    y_proj = jax.nn.relu(jnp.einsum("blh,oh->blo", y, w) + b)
    scores = jnp.einsum("bqh,bkh->bqk", x_proj, y_proj)
    scores = jnp.where(y_mask[:, None, :] > 0, -jnp.inf, scores)
    alpha = jax.nn.softmax(scores, axis=-1)
    return jnp.einsum("bqk,bkh->bqh", alpha, y)


def _reference_bf16(x, y, y_mask, w, b):
    """Mirrors the kernel's numerics: bf16 matmul inputs, f32 accumulation."""
    bf = lambda a: a.astype(jnp.bfloat16).astype(jnp.float32)
    xb, yb, wb, bb = bf(x), bf(y), bf(w), b.astype(jnp.float32)
    x_proj = bf(jax.nn.relu(jnp.einsum("blh,oh->blo", xb, wb) + bb))
    y_proj = bf(jax.nn.relu(jnp.einsum("blh,oh->blo", yb, wb) + bb))
    scores = jnp.einsum("bqh,bkh->bqk", x_proj, y_proj)
    scores = jnp.where(y_mask[:, None, :] > 0, _NEG, scores)
    alpha = bf(jax.nn.softmax(scores, axis=-1))
    return jnp.einsum("bqk,bkh->bqh", alpha, yb)


def _run_case(key, B, L1, L2, H, n_pad):
    kx, ky, kw, kb = jax.random.split(key, 4)
    x = jax.random.normal(kx, (B, L1, H), dtype=jnp.float32)
    y = jax.random.normal(ky, (B, L2, H), dtype=jnp.float32)
    y_mask = jnp.zeros((B, L2), dtype=jnp.float32).at[:, L2 - n_pad:].set(1.0)
    w = jax.random.normal(kw, (H, H), dtype=jnp.float32) * (1.0 / jnp.sqrt(H))
    b = jax.random.normal(kb, (H,), dtype=jnp.float32) * 0.01

    out = jax.block_until_ready(seq_attn_match(x, y, y_mask, w, b))
    assert out.shape == (B, L1, H)
    assert bool(jnp.all(jnp.isfinite(out)))

    ref_bf16 = _reference_bf16(x, y, y_mask, w, b)
    err_bf16 = jnp.max(jnp.abs(out - ref_bf16))
    assert jnp.allclose(out, ref_bf16, atol=2e-2, rtol=2e-2), (
        f"max abs err vs bf16-mirrored ref {err_bf16}")

    ref_f32 = _reference_f32(x, y, y_mask, w, b)
    err_f32 = jnp.max(jnp.abs(out - ref_f32))
    assert jnp.allclose(out, ref_f32, atol=2e-1, rtol=2e-1), (
        f"max abs err vs f32 ref {err_f32}")


if __name__ == "__main__":
    key = jax.random.PRNGKey(0)
    k1, k2 = jax.random.split(key)

    # Small primary case (single L1 tile).
    _run_case(k1, B=2, L1=8, L2=8, H=32, n_pad=2)

    # Case exercising the L1-tile grid axis + cached y_proj scratch path.
    _run_case(k2, B=2, L1=300, L2=20, H=64, n_pad=5)

    print("KERNEL_OK")
</pallas_src>

<mosaic_0001>
module attributes {stable_mosaic.version = 11 : i64} {
  func.func @_seq_attn_kernel(%arg0: i32, %arg1: i32, %arg2: memref<128x128xbf16, #tpu.memory_space<vmem>>, %arg3: memref<1x128xf32, #tpu.memory_space<vmem>>, %arg4: memref<1x16x128xbf16, #tpu.memory_space<vmem>>, %arg5: memref<1x128x128xbf16, #tpu.memory_space<vmem>>, %arg6: memref<1x1x128xf32, #tpu.memory_space<vmem>>, %arg7: memref<1x16x128xf32, #tpu.memory_space<vmem>>, %arg8: memref<1x128x128xbf16, #tpu.memory_space<vmem>>) attributes {dimension_semantics = [#tpu.dimension_semantics<parallel>, #tpu.dimension_semantics<arbitrary>], iteration_bounds = array<i64: 2, 1>, scalar_prefetch = 0 : i64, scratch_operands = 1 : i64, tpu.core_type = #tpu.core_type<tc>, window_params = [{pipeline_mode = #tpu.pipeline_mode<synchronous>, transform_indices = @transform_0, window_bounds = array<i64: 128, 128>}, {pipeline_mode = #tpu.pipeline_mode<synchronous>, transform_indices = @transform_1, window_bounds = array<i64: 1, 128>}, {transform_indices = @transform_2, window_bounds = array<i64: 1, 16, 128>}, {transform_indices = @transform_3, window_bounds = array<i64: 1, 128, 128>}, {transform_indices = @transform_4, window_bounds = array<i64: 1, 1, 128>}, {transform_indices = @transform_5, window_bounds = array<i64: 1, 16, 128>}]} {
    %c0 = arith.constant 0 : index
    %c0_0 = arith.constant 0 : index
    %0 = vector.load %arg2[%c0, %c0_0] : memref<128x128xbf16, #tpu.memory_space<vmem>>, vector<128x128xbf16>
    %c0_1 = arith.constant 0 : index
    %c0_2 = arith.constant 0 : index
    %1 = vector.load %arg3[%c0_1, %c0_2] : memref<1x128xf32, #tpu.memory_space<vmem>>, vector<1x128xf32>
    %c0_i32 = arith.constant 0 : i32
    %2 = arith.cmpi eq, %arg1, %c0_i32 : i32
    %3 = arith.extui %2 : i1 to i32
    %c0_i32_3 = arith.constant 0 : i32
    %4 = arith.cmpi ne, %3, %c0_i32_3 : i32
    scf.if %4 {
      %c0_24 = arith.constant 0 : index
      %c0_25 = arith.constant 0 : index
      %c0_26 = arith.constant 0 : index
      %33 = vector.load %arg5[%c0_24, %c0_25, %c0_26] : memref<1x128x128xbf16, #tpu.memory_space<vmem>>, vector<1x128x128xbf16>
      %34 = vector.shape_cast %33 : vector<1x128x128xbf16> to vector<128x128xbf16>
      %cst_27 = arith.constant dense<0.000000e+00> : vector<128x128xf32>
      %35 = tpu.matmul %34, %0, %cst_27 {dimension_numbers = #tpu.dot_dimension_numbers<[1], [0], [0], [1], [0, 0, 1, 1], [], []>} : vector<128x128xbf16>, vector<128x128xbf16>, vector<128x128xf32> -> vector<128x128xf32>
      %36 = vector.broadcast %1 : vector<1x128xf32> to vector<128x128xf32>
      %37 = arith.addf %35, %36 : vector<128x128xf32>
      %cst_28 = arith.constant 0.000000e+00 : f32
      %38 = vector.broadcast %cst_28 : f32 to vector<128x128xf32>
      %39 = arith.maximumf %37, %38 : vector<128x128xf32>
      %40 = arith.truncf %39 : vector<128x128xf32> to vector<128x128xbf16>
      %41 = vector.shape_cast %40 : vector<128x128xbf16> to vector<1x128x128xbf16>
      %c0_29 = arith.constant 0 : index
      %c0_30 = arith.constant 0 : index
      %c0_31 = arith.constant 0 : index
      %42 = vector.load %arg8[%c0_29, %c0_30, %c0_31] : memref<1x128x128xbf16, #tpu.memory_space<vmem>>, vector<1x128x128xbf16>
      tpu.vector_store %arg8[%c0_29, %c0_30, %c0_31], %41 {strides = array<i32>} : memref<1x128x128xbf16, #tpu.memory_space<vmem>>, vector<1x128x128xbf16>,
    } else {
    }
    %c0_4 = arith.constant 0 : index
    %c0_5 = arith.constant 0 : index
    %c0_6 = arith.constant 0 : index
    %5 = vector.load %arg4[%c0_4, %c0_5, %c0_6] : memref<1x16x128xbf16, #tpu.memory_space<vmem>>, vector<1x16x128xbf16>
    %6 = vector.shape_cast %5 : vector<1x16x128xbf16> to vector<16x128xbf16>
    %cst = arith.constant dense<0.000000e+00> : vector<16x128xf32>
    %7 = tpu.matmul %6, %0, %cst {dimension_numbers = #tpu.dot_dimension_numbers<[1], [0], [0], [1], [0, 0, 1, 1], [], []>} : vector<16x128xbf16>, vector<128x128xbf16>, vector<16x128xf32> -> vector<16x128xf32>
    %8 = vector.broadcast %1 : vector<1x128xf32> to vector<16x128xf32>
    %9 = arith.addf %7, %8 : vector<16x128xf32>
    %cst_7 = arith.constant 0.000000e+00 : f32
    %10 = vector.broadcast %cst_7 : f32 to vector<16x128xf32>
    %11 = arith.maximumf %9, %10 : vector<16x128xf32>
    %12 = arith.truncf %11 : vector<16x128xf32> to vector<16x128xbf16>
    %13 = vector.shape_cast %12 : vector<16x128xbf16> to vector<1x16x128xbf16>
    %c0_8 = arith.constant 0 : index
    %c0_9 = arith.constant 0 : index
    %c0_10 = arith.constant 0 : index
    %14 = vector.load %arg8[%c0_8, %c0_9, %c0_10] : memref<1x128x128xbf16, #tpu.memory_space<vmem>>, vector<1x128x128xbf16>
    %cst_11 = arith.constant dense<0.000000e+00> : vector<1x16x128xf32>
    %15 = tpu.matmul %13, %14, %cst_11 {dimension_numbers = #tpu.dot_dimension_numbers<[2], [2], [1], [1], [0, 0, 0, 1, 1, 1], [0], [0]>} : vector<1x16x128xbf16>, vector<1x128x128xbf16>, vector<1x16x128xf32> -> vector<1x16x128xf32>
    %c0_12 = arith.constant 0 : index
    %c0_13 = arith.constant 0 : index
    %c0_14 = arith.constant 0 : index
    %16 = vector.load %arg6[%c0_12, %c0_13, %c0_14] : memref<1x1x128xf32, #tpu.memory_space<vmem>>, vector<1x1x128xf32>
    %17 = vector.broadcast %16 : vector<1x1x128xf32> to vector<1x16x128xf32>
    %18 = arith.addf %15, %17 : vector<1x16x128xf32>
    %cst_15 = arith.constant dense<0xFF800000> : vector<1x16xf32>
    %19 = vector.multi_reduction <maximumf>, %18, %cst_15 [2] : vector<1x16x128xf32> to vector<1x16xf32>
    %20 = vector.shape_cast %19 : vector<1x16xf32> to vector<1x16x1xf32>
    %21 = vector.broadcast %20 : vector<1x16x1xf32> to vector<1x16x128xf32>
    %22 = arith.subf %18, %21 : vector<1x16x128xf32>
    %23 = math.exp %22 : vector<1x16x128xf32>
    %cst_16 = arith.constant dense<0.000000e+00> : vector<1x16xf32>
    %24 = vector.multi_reduction <add>, %23, %cst_16 [2] : vector<1x16x128xf32> to vector<1x16xf32>
    %25 = vector.shape_cast %24 : vector<1x16xf32> to vector<1x16x1xf32>
    %26 = tpu.reciprocal %25 {approx = true} : vector<1x16x1xf32> -> vector<1x16x1xf32>
    %27 = vector.broadcast %26 : vector<1x16x1xf32> to vector<1x16x128xf32>
    %28 = arith.mulf %23, %27 : vector<1x16x128xf32>
    %29 = arith.truncf %28 : vector<1x16x128xf32> to vector<1x16x128xbf16>
    %c0_17 = arith.constant 0 : index
    %c0_18 = arith.constant 0 : index
    %c0_19 = arith.constant 0 : index
    %30 = vector.load %arg5[%c0_17, %c0_18, %c0_19] : memref<1x128x128xbf16, #tpu.memory_space<vmem>>, vector<1x128x128xbf16>
    %cst_20 = arith.constant dense<0.000000e+00> : vector<1x16x128xf32>
    %31 = tpu.matmul %29, %30, %cst_20 {dimension_numbers = #tpu.dot_dimension_numbers<[2], [1], [1], [2], [0, 0, 0, 1, 1, 2], [0], [0]>} : vector<1x16x128xbf16>, vector<1x128x128xbf16>, vector<1x16x128xf32> -> vector<1x16x128xf32>
    %c0_21 = arith.constant 0 : index
    %c0_22 = arith.constant 0 : index
    %c0_23 = arith.constant 0 : index
    %32 = vector.load %arg7[%c0_21, %c0_22, %c0_23] : memref<1x16x128xf32, #tpu.memory_space<vmem>>, vector<1x16x128xf32>
    tpu.vector_store %arg7[%c0_21, %c0_22, %c0_23], %31 {strides = array<i32>} : memref<1x16x128xf32, #tpu.memory_space<vmem>>, vector<1x16x128xf32>,
    return
  }
  func.func @transform_0(%arg0: i32, %arg1: i32) -> (i32, i32) {
    %c0_i32 = arith.constant 0 : i32
    %c0_i32_0 = arith.constant 0 : i32
    %c0_i32_1 = arith.constant 0 : i32
    return %c0_i32, %c0_i32_0 : i32, i32
  }
  func.func @transform_1(%arg0: i32, %arg1: i32) -> (i32, i32) {
    %c0_i32 = arith.constant 0 : i32
    %c0_i32_0 = arith.constant 0 : i32
    %c0_i32_1 = arith.constant 0 : i32
    return %c0_i32, %c0_i32_0 : i32, i32
  }
  func.func @transform_2(%arg0: i32, %arg1: i32) -> (i32, i32, i32) {
    %c0_i32 = arith.constant 0 : i32
    %c0_i32_0 = arith.constant 0 : i32
    return %arg0, %arg1, %c0_i32 : i32, i32, i32
  }
  func.func @transform_3(%arg0: i32, %arg1: i32) -> (i32, i32, i32) {
    %c0_i32 = arith.constant 0 : i32
    %c0_i32_0 = arith.constant 0 : i32
    %c0_i32_1 = arith.constant 0 : i32
    return %arg0, %c0_i32, %c0_i32_0 : i32, i32, i32
  }
  func.func @transform_4(%arg0: i32, %arg1: i32) -> (i32, i32, i32) {
    %c0_i32 = arith.constant 0 : i32
    %c0_i32_0 = arith.constant 0 : i32
    %c0_i32_1 = arith.constant 0 : i32
    return %arg0, %c0_i32, %c0_i32_0 : i32, i32, i32
  }
  func.func @transform_5(%arg0: i32, %arg1: i32) -> (i32, i32, i32) {
    %c0_i32 = arith.constant 0 : i32
    %c0_i32_0 = arith.constant 0 : i32
    return %arg0, %arg1, %c0_i32 : i32, i32, i32
  }
}

</mosaic_0001>

<llo_original>
// kernel: tpu_custom_call.1
$region0: #{tpu_custom_call.1}
  #allocation0 [shape = 'u32[]', space=smem, size = 0x4, offset = 0x4, fixed_abs, tag = 'smem constant byte address 0x4 - core index']
  #allocation1 [shape = 'u32[144,128]{1,0:T(1,128)}', space=vmem, size = 0x12000, scoped, tag = 'internal scratch']
  #allocation2 [shape = 'bf16[1,128,128]{2,1,0:T(16,128)(2,1)}', space=vmem, size = 0x8000, scoped, tag = 'scratch operand']
  %s0 = inlined_call_operand.hbm [shape: bf16[128,128], index: 0, kind: input, shape index: {}]
  %s1 = inlined_call_operand.vmem [shape: f32[1,128], index: 1, kind: input, shape index: {}]
  %s2 = inlined_call_operand.hbm [shape: bf16[2,16,128], index: 2, kind: input, shape index: {}]
  %s3 = inlined_call_operand.hbm [shape: bf16[2,128,128], index: 3, kind: input, shape index: {}]
  %s4 = inlined_call_operand.vmem [shape: f32[2,1,128], index: 4, kind: input, shape index: {}]
  %s5 = inlined_call_operand.hbm [shape: f32[2,16,128], index: 5, kind: output, shape index: {}]
  %s6 = sld [smem:[#allocation0]]
  $region69: #{tpu_custom_call.1} parent=0
    _
  %s8 = ssub.s32 1, %s6
  %s9 = scalar_select 0, %s8, %s6
  $region1: #{tpu_custom_call.1} parent=0
    #allocation3 [shape = 'u8[32768]{0}', space=vmem, size = 0x8000, scoped, tag = 'input window, operand 0, single buffered']
    #allocation4 [shape = 's32[2]{0}', space=sflag, size = 0x8, scoped, tag = 'scoped memory for tpu_custom_call.1']
    #allocation5 [shape = 's32[2]{0}', space=sflag, size = 0x8, scoped, tag = 'scoped memory for tpu_custom_call.1']
    #allocation6 [shape = 'u8[8192]{0}', space=vmem, size = 0x2000, scoped, tag = 'input window, operand 2']
    #allocation7 [shape = 's32[2]{0}', space=sflag, size = 0x8, scoped, tag = 'scoped memory for tpu_custom_call.1']
    #allocation8 [shape = 'u8[65536]{0}', space=vmem, size = 0x10000, scoped, tag = 'input window, operand 3']
    #allocation9 [shape = 'u8[16384]{0}', space=vmem, size = 0x4000, scoped, tag = 'output window, operand 0']
    %10 = vsyncpa [#allocation4], 0
    %11 = vsyncpa [#allocation7], 0
    %s12 = scalar_lea.sflag [#allocation7], 1
    %13 = vsyncpa %s12, 0
    %14 = vsyncpa [#allocation5], 0
    %s15 = scalar_lea.sflag [#allocation5], 1
    %16 = vsyncpa %s15, 0
    loop: start=0, step=1, limit=4
    $region2: #{tpu_custom_call.1} parent=1 // loop_pre_header
      _
    $region3: #{tpu_custom_call.1} parent=1 // loop_header
      %s18 = sphi 0, %s22
      %p19 = scmp.ge.s32.totalorder %s18, 4
      %s25 = sphi 0, %s37
      %s26 = sphi 0, %s33
      %s27 = sphi 0, %s25
      %s28 = sphi 0, %s26
      %s29 = sphi 0, %s27
      %s30 = sphi 0, %s28
      %s38 = sphi 0, %s38
      %s40 = sphi 0, %s38
      %s41 = sphi 0, %s40
      %s55 = sphi 0, %s41
      %s59 = sphi 0, %s59
      %s61 = sphi 0, %s59
      %s62 = sphi 0, %s61
      %s76 = sphi 0, %s62
      %s84 = sphi 0, %s86
      %s87 = sphi 0, %s84
      %s88 = sphi 0, %s87
      %s104 = sphi 0, %s88
      %s110 = sphi 0, %s112
      %s113 = sphi 0, %s110
      %s114 = sphi 0, %s113
      %s130 = sphi 0, %s114
      %s136 = sphi 0, %s138
      %s139 = sphi 0, %s136
      %s140 = sphi 0, %s139
      %s156 = sphi 0, %s140
      %s164 = sphi 0, %s166
      %s167 = sphi 0, %s164
      %s168 = sphi 0, %s167
      %s184 = sphi 0, %s168
    $region4: #{tpu_custom_call.1} parent=1 // loop_header_branch
      %21 = sbr.rel (%p19) target = $region8
    $region5: #{tpu_custom_call.1} parent=1 // loop_body
      %s23 = ssub.s32 %s18, 1
      %s24 = ssub.s32 %s18, 2
      %s31 = sadd.s32 1, %s26
      %p32 = scmp.ge.s32.totalorder %s31, 1
      %s33 = scalar_select %p32, 0, %s31
      %s34 = sadd.s32 1, %s25
      %s35 = scalar_select %p32, %s34, %s25
      %p36 = scmp.ge.s32.totalorder %s35, 2
      %s37 = scalar_select %p36, 0, %s35
      %s39 = sadd.s32 %s38, 1
      %p42 = scmp.eq.s32.totalorder %s18, 1
      %p43 = scmp.ne.s32.totalorder %s38, %s40
      %p44 = scmp.eq.s32.totalorder %s18, 0
      %p45 = por %p43, %p44
      %p46 = scmp.ne.s32.totalorder %s38, %s40
      %p47 = scmp.eq.s32.totalorder %s23, 1
      %p48 = por %p46, %p47
      %p49 = scmp.ne.s32.totalorder %s40, %s41
      %p50 = scmp.eq.s32.totalorder %s23, 0
      %p51 = por %p49, %p50
      %p52 = scmp.ne.s32.totalorder %s40, %s41
      %p53 = scmp.eq.s32.totalorder %s24, 1
      %p54 = por %p52, %p53
      %p56 = scmp.ne.s32.totalorder %s41, %s55
      %p57 = scmp.eq.s32.totalorder %s24, 0
      %p58 = por %p56, %p57
      %s60 = sadd.s32 %s59, 1
      %p63 = scmp.eq.s32.totalorder %s18, 1
      %p64 = scmp.ne.s32.totalorder %s59, %s61
      %p65 = scmp.eq.s32.totalorder %s18, 0
      %p66 = por %p64, %p65
      %p67 = scmp.ne.s32.totalorder %s59, %s61
      %p68 = scmp.eq.s32.totalorder %s23, 1
      %p69 = por %p67, %p68
      %p70 = scmp.ne.s32.totalorder %s61, %s62
      %p71 = scmp.eq.s32.totalorder %s23, 0
      %p72 = por %p70, %p71
      %p73 = scmp.ne.s32.totalorder %s61, %s62
      %p74 = scmp.eq.s32.totalorder %s24, 1
      %p75 = por %p73, %p74
      %p77 = scmp.ne.s32.totalorder %s62, %s76
      %p78 = scmp.eq.s32.totalorder %s24, 0
      %p79 = por %p77, %p78
      %s80 = ssub.s32 %s25, %s37
      %s81 = ssub.s32 %s26, %s33
      %s82 = sor.u32 %s80, %s81
      %p83 = scmp.eq.s32.totalorder %s82, 0
      %s85 = sadd.s32 %s84, 1
      %s86 = scalar_select %p83, %s84, %s85
      %p89 = pneg %p83
      %p90 = scmp.eq.s32.totalorder %s18, 1
      %p91 = por %p89, %p90
      %p92 = scmp.ne.s32.totalorder %s84, %s87
      %p93 = scmp.eq.s32.totalorder %s18, 0
      %p94 = por %p92, %p93
      %p95 = scmp.ne.s32.totalorder %s84, %s87
      %p96 = scmp.eq.s32.totalorder %s23, 1
      %p97 = por %p95, %p96
      %p98 = scmp.ne.s32.totalorder %s87, %s88
      %p99 = scmp.eq.s32.totalorder %s23, 0
      %p100 = por %p98, %p99
      %p101 = scmp.ne.s32.totalorder %s87, %s88
      %p102 = scmp.eq.s32.totalorder %s24, 1
      %p103 = por %p101, %p102
      %p105 = scmp.ne.s32.totalorder %s88, %s104
      %p106 = scmp.eq.s32.totalorder %s24, 0
      %p107 = por %p105, %p106
      %s108 = ssub.s32 %s25, %s37
      %p109 = scmp.eq.s32.totalorder %s108, 0
      %s111 = sadd.s32 %s110, 1
      %s112 = scalar_select %p109, %s110, %s111
      %p115 = pneg %p109
      %p116 = scmp.eq.s32.totalorder %s18, 1
      %p117 = por %p115, %p116
      %p118 = scmp.ne.s32.totalorder %s110, %s113
      %p119 = scmp.eq.s32.totalorder %s18, 0
      %p120 = por %p118, %p119
      %p121 = scmp.ne.s32.totalorder %s110, %s113
      %p122 = scmp.eq.s32.totalorder %s23, 1
      %p123 = por %p121, %p122
      %p124 = scmp.ne.s32.totalorder %s113, %s114
      %p125 = scmp.eq.s32.totalorder %s23, 0
      %p126 = por %p124, %p125
      %p127 = scmp.ne.s32.totalorder %s113, %s114
      %p128 = scmp.eq.s32.totalorder %s24, 1
      %p129 = por %p127, %p128
      %p131 = scmp.ne.s32.totalorder %s114, %s130
      %p132 = scmp.eq.s32.totalorder %s24, 0
      %p133 = por %p131, %p132
      %s134 = ssub.s32 %s25, %s37
      %p135 = scmp.eq.s32.totalorder %s134, 0
      %s137 = sadd.s32 %s136, 1
      %s138 = scalar_select %p135, %s136, %s137
      %p141 = pneg %p135
      %p142 = scmp.eq.s32.totalorder %s18, 1
      %p143 = por %p141, %p142
      %p144 = scmp.ne.s32.totalorder %s136, %s139
      %p145 = scmp.eq.s32.totalorder %s18, 0
      %p146 = por %p144, %p145
      %p147 = scmp.ne.s32.totalorder %s136, %s139
      %p148 = scmp.eq.s32.totalorder %s23, 1
      %p149 = por %p147, %p148
      %p150 = scmp.ne.s32.totalorder %s139, %s140
      %p151 = scmp.eq.s32.totalorder %s23, 0
      %p152 = por %p150, %p151
      %p153 = scmp.ne.s32.totalorder %s139, %s140
      %p154 = scmp.eq.s32.totalorder %s24, 1
      %p155 = por %p153, %p154
      %p157 = scmp.ne.s32.totalorder %s140, %s156
      %p158 = scmp.eq.s32.totalorder %s24, 0
      %p159 = por %p157, %p158
      %s160 = ssub.s32 %s25, %s37
      %s161 = ssub.s32 %s26, %s33
      %s162 = sor.u32 %s160, %s161
      %p163 = scmp.eq.s32.totalorder %s162, 0
      %s165 = sadd.s32 %s164, 1
      %s166 = scalar_select %p163, %s164, %s165
      %p169 = pneg %p163
      %p170 = scmp.eq.s32.totalorder %s18, 1
      %p171 = por %p169, %p170
      %p172 = scmp.ne.s32.totalorder %s164, %s167
      %p173 = scmp.eq.s32.totalorder %s18, 0
      %p174 = por %p172, %p173
      %p175 = scmp.ne.s32.totalorder %s164, %s167
      %p176 = scmp.eq.s32.totalorder %s23, 1
      %p177 = por %p175, %p176
      %p178 = scmp.ne.s32.totalorder %s167, %s168
      %p179 = scmp.eq.s32.totalorder %s23, 0
      %p180 = por %p178, %p179
      %p181 = scmp.ne.s32.totalorder %s167, %s168
      %p182 = scmp.eq.s32.totalorder %s24, 1
      %p183 = por %p181, %p182
      %p185 = scmp.ne.s32.totalorder %s168, %s184
      %p186 = scmp.eq.s32.totalorder %s24, 0
      %p187 = por %p185, %p186
      %p188 = scmp.le.s32.totalorder 1, %s18
      %p189 = scmp.lt.s32.totalorder %s18, 3
      %p190 = pnand %p188, %p189
      %p191 = pneg %p190
      // Predicated region
      $region9: #{tpu_custom_call.1} parent=5 // pred_check
        _
      $region10: #{tpu_custom_call.1} parent=5 // pred_check_branch
        %193 = sbr.rel (%p190) target = $region12
      $region11: #{tpu_custom_call.1} parent=5 // pred_region
        %s194 = ssub.s32 %s18, 1
        // Predicated region
        $region13: #{tpu_custom_call.1} parent=11 // pred_check
          %p195 = pneg %p51
        $region14: #{tpu_custom_call.1} parent=11 // pred_check_branch
          %197 = sbr.rel (%p195) target = $region16
        $region15: #{tpu_custom_call.1} parent=11 // pred_region
          %s199 = ssub.s32 1024, 1024
          %200 = vsyncadd [#allocation4], %s199
          %s201 = sshll.u32 [#allocation3], 4
          %s202 = int_to_ptr.vmem [resolvable:$true] %s201
          %207 = dma.hbm_to_vmem [thread:$0]  %s0, 1024, %s202, [#allocation4], 64, 64, 4
        $region16: #{tpu_custom_call.1} parent=11 // pred_fallthru
          _
        // Predicated region
        $region17: #{tpu_custom_call.1} parent=11 // pred_check
          %p208 = pneg %p72
        $region18: #{tpu_custom_call.1} parent=11 // pred_check_branch
          %210 = sbr.rel (%p208) target = $region20
        $region19: #{tpu_custom_call.1} parent=11 // pred_region
          _
        $region20: #{tpu_custom_call.1} parent=11 // pred_fallthru
          _
      $region12: #{tpu_custom_call.1} parent=5 // pred_fallthru
        _
      %p211 = scmp.lt.s32.totalorder %s18, 2
      // Predicated region
      $region21: #{tpu_custom_call.1} parent=5 // pred_check
        %p212 = pneg %p211
      $region22: #{tpu_custom_call.1} parent=5 // pred_check_branch
        %214 = sbr.rel (%p212) target = $region24
      $region23: #{tpu_custom_call.1} parent=5 // pred_region
        // Predicated region
        $region25: #{tpu_custom_call.1} parent=23 // pred_check
          %p215 = pneg %p94
        $region26: #{tpu_custom_call.1} parent=23 // pred_check_branch
          %217 = sbr.rel (%p215) target = $region28
        $region27: #{tpu_custom_call.1} parent=23 // pred_region
          %s218 = sand.u32 %s18, 1
          %s219 = scalar_lea.sflag [#allocation7], %s218
          %s220 = sand.u32 %s84, 1
          %s221 = smul.addr %s220, 8
          %s222 = scalar_lea.vmem [#allocation6], %s221
          %s223 = smul.u32 2, %s26
          %s225 = ssub.s32 128, 128
          %226 = vsyncadd %s219, %s225
          %s227 = smul.addr %s25, 2
          %s228 = sadd.s32 %s223, %s227
          %s229 = smul.addr %s228, 64
          %s230 = scalar_lea.hbm %s2, %s229
          %s231 = sshll.u32 %s222, 4
          %s232 = int_to_ptr.vmem [resolvable:$true] %s231
          %237 = dma.hbm_to_vmem [thread:$0]  %s230, 128, %s232, %s219, 64, 64, 4
        $region28: #{tpu_custom_call.1} parent=23 // pred_fallthru
          _
        // Predicated region
        $region29: #{tpu_custom_call.1} parent=23 // pred_check
          %p238 = pneg %p120
        $region30: #{tpu_custom_call.1} parent=23 // pred_check_branch
          %240 = sbr.rel (%p238) target = $region32
        $region31: #{tpu_custom_call.1} parent=23 // pred_region
          %s241 = sand.u32 %s18, 1
          %s242 = scalar_lea.sflag [#allocation7], %s241
          %s243 = sand.u32 %s110, 1
          %s244 = smul.addr %s243, 64
          %s245 = scalar_lea.vmem [#allocation8], %s244
          %s247 = ssub.s32 1024, 1024
          %248 = vsyncadd %s242, %s247
          %s249 = smul.addr %s25, 16
          %s250 = smul.addr %s249, 64
          %s251 = scalar_lea.hbm %s3, %s250
          %s252 = sshll.u32 %s245, 4
          %s253 = int_to_ptr.vmem [resolvable:$true] %s252
          %258 = dma.hbm_to_vmem [thread:$0]  %s251, 1024, %s253, %s242, 64, 64, 4
        $region32: #{tpu_custom_call.1} parent=23 // pred_fallthru
          _
        // Predicated region
        $region33: #{tpu_custom_call.1} parent=23 // pred_check
          %p259 = pneg %p146
        $region34: #{tpu_custom_call.1} parent=23 // pred_check_branch
          %261 = sbr.rel (%p259) target = $region36
        $region35: #{tpu_custom_call.1} parent=23 // pred_region
          %p262 = scmp.lt.s32.totalorder %s25, 1
          %s263 = scalar_select %p262, %s25, 1
          %s264 = scalar_lea.vmem %s4, %s263
        $region36: #{tpu_custom_call.1} parent=23 // pred_fallthru
          _
      $region24: #{tpu_custom_call.1} parent=5 // pred_fallthru
        _
      %p265 = scmp.le.s32.totalorder 1, %s18
      %p266 = scmp.lt.s32.totalorder %s18, 3
      %p267 = pnand %p265, %p266
      %p268 = pneg %p267
      // Predicated region
      $region37: #{tpu_custom_call.1} parent=5 // pred_check
        _
      $region38: #{tpu_custom_call.1} parent=5 // pred_check_branch
        %270 = sbr.rel (%p267) target = $region40
      $region39: #{tpu_custom_call.1} parent=5 // pred_region
        %s271 = ssub.s32 %s18, 1
        // Predicated region
        $region41: #{tpu_custom_call.1} parent=39 // pred_check
          %p272 = pneg %p51
        $region42: #{tpu_custom_call.1} parent=39 // pred_check_branch
          %274 = sbr.rel (%p272) target = $region44
        $region43: #{tpu_custom_call.1} parent=39 // pred_region
          %275 = dma.done [#allocation4], 1024
        $region44: #{tpu_custom_call.1} parent=39 // pred_fallthru
          _
        %s276 = sand.u32 %s23, 1
        %s277 = scalar_lea.sflag [#allocation7], %s276
        %s278 = sand.u32 %s87, 1
        %s279 = smul.addr %s278, 8
        %s280 = scalar_lea.vmem [#allocation6], %s279
        // Predicated region
        $region45: #{tpu_custom_call.1} parent=39 // pred_check
          %p281 = pneg %p100
        $region46: #{tpu_custom_call.1} parent=39 // pred_check_branch
          %283 = sbr.rel (%p281) target = $region48
        $region47: #{tpu_custom_call.1} parent=39 // pred_region
          %284 = dma.done %s277, 128
        $region48: #{tpu_custom_call.1} parent=39 // pred_fallthru
          _
        %s285 = sand.u32 %s23, 1
        %s286 = scalar_lea.sflag [#allocation7], %s285
        %s287 = sand.u32 %s113, 1
        %s288 = smul.addr %s287, 64
        %s289 = scalar_lea.vmem [#allocation8], %s288
        // Predicated region
        $region49: #{tpu_custom_call.1} parent=39 // pred_check
          %p290 = pneg %p126
        $region50: #{tpu_custom_call.1} parent=39 // pred_check_branch
          %292 = sbr.rel (%p290) target = $region52
        $region51: #{tpu_custom_call.1} parent=39 // pred_region
          %293 = dma.done %s286, 1024
        $region52: #{tpu_custom_call.1} parent=39 // pred_fallthru
          _
        %p294 = pneg %p51
        %p295 = pneg %p48
        %p296 = pneg %p72
        %p297 = pneg %p69
        %s298 = sand.u32 %s23, 1
        %s299 = scalar_lea.sflag [#allocation7], %s298
        %s300 = sand.u32 %s87, 1
        %s301 = smul.addr %s300, 8
        %s302 = scalar_lea.vmem [#allocation6], %s301
        %p303 = pneg %p100
        %p304 = pneg %p97
        %s305 = sand.u32 %s23, 1
        %s306 = scalar_lea.sflag [#allocation7], %s305
        %s307 = sand.u32 %s113, 1
        %s308 = smul.addr %s307, 64
        %s309 = scalar_lea.vmem [#allocation8], %s308
        %p310 = pneg %p126
        %p311 = pneg %p123
        %p312 = scmp.lt.s32.totalorder %s27, 1
        %s313 = scalar_select %p312, %s27, 1
        %s314 = scalar_lea.vmem %s4, %s313
        %p315 = pneg %p152
        %p316 = pneg %p149
        %p317 = pneg %p180
        %p318 = pneg %p177
        %s319 = sand.u32 %s167, 1
        %s320 = scalar_lea.sflag [#allocation5], %s319
        %s321 = sand.u32 %s167, 1
        %s322 = smul.addr %s321, 16
        %s323 = scalar_lea.vmem [#allocation9], %s322
        %s324 = smul.u32 2, %s28
        %p325 = scmp.lt.s32.totalorder %s27, 1
        %s326 = scalar_select %p325, %s27, 1
        %s327 = scalar_lea.vmem %s4, %s326
        %s328 = smul.u32 2, %s28
        %v330 = vld [vmem:[#allocation3] sm:$0xf]
        %v331 = vld [vmem:[#allocation3 + $0x4] sm:$0xf]
        %v332 = vld [vmem:[#allocation3 + $0x8] sm:$0xf]
        %v333 = vld [vmem:[#allocation3 + $0xc] sm:$0xf]
        %v334 = vld [vmem:[#allocation3 + $0x10] sm:$0xf]
        %v335 = vld [vmem:[#allocation3 + $0x14] sm:$0xf]
        %v336 = vld [vmem:[#allocation3 + $0x18] sm:$0xf]
        %v337 = vld [vmem:[#allocation3 + $0x1c] sm:$0xf]
        %v338 = vld [vmem:[#allocation3 + $0x20] sm:$0xf]
        %v339 = vld [vmem:[#allocation3 + $0x24] sm:$0xf]
        %v340 = vld [vmem:[#allocation3 + $0x28] sm:$0xf]
        %v341 = vld [vmem:[#allocation3 + $0x2c] sm:$0xf]
        %v342 = vld [vmem:[#allocation3 + $0x30] sm:$0xf]
        %v343 = vld [vmem:[#allocation3 + $0x34] sm:$0xf]
        %v344 = vld [vmem:[#allocation3 + $0x38] sm:$0xf]
        %v345 = vld [vmem:[#allocation3 + $0x3c] sm:$0xf]
        %v346 = vld [vmem:[%s1] sm:$0x1]
        %p347 = scmp.eq.s32.totalorder %s28, 0
        // Predicated region
        $region53: #{tpu_custom_call.1} parent=39 // pred_check
          %p348 = pneg %p347
        $region54: #{tpu_custom_call.1} parent=39 // pred_check_branch
          %350 = sbr.rel (%p348) target = $region56
        $region55: #{tpu_custom_call.1} parent=39 // pred_region
          %v351 = vld [vmem:[%s289] sm:$0xf]
          %v352 = vld [vmem:[%s289 + $0x4] sm:$0xf]
          %v353 = vld [vmem:[%s289 + $0x8] sm:$0xf]
          %v354 = vld [vmem:[%s289 + $0xc] sm:$0xf]
          %v355 = vld [vmem:[%s289 + $0x10] sm:$0xf]
          %v356 = vld [vmem:[%s289 + $0x14] sm:$0xf]
          %v357 = vld [vmem:[%s289 + $0x18] sm:$0xf]
          %v358 = vld [vmem:[%s289 + $0x1c] sm:$0xf]
          %v359 = vld [vmem:[%s289 + $0x20] sm:$0xf]
          %v360 = vld [vmem:[%s289 + $0x24] sm:$0xf]
          %v361 = vld [vmem:[%s289 + $0x28] sm:$0xf]
          %v362 = vld [vmem:[%s289 + $0x2c] sm:$0xf]
          %v363 = vld [vmem:[%s289 + $0x30] sm:$0xf]
          %v364 = vld [vmem:[%s289 + $0x34] sm:$0xf]
          %v365 = vld [vmem:[%s289 + $0x38] sm:$0xf]
          %v366 = vld [vmem:[%s289 + $0x3c] sm:$0xf]
          %v368 = vlaneseq
          %v369 = vshrl.u32 %v368, 7
          %v370 = vsub.s32 0, %v369
          %v371 = vrot.slane %v346, %v370
          %v389 = vunpack.c.l.b16 %v351
          %v390 = vunpack.c.l.b16 %v352
          %v391 = vunpack.c.l.b16 %v353
          %v392 = vunpack.c.l.b16 %v354
          %v393 = vunpack.c.l.b16 %v355
          %v394 = vunpack.c.l.b16 %v356
          %v395 = vunpack.c.l.b16 %v357
          %v396 = vunpack.c.l.b16 %v358
          %v397 = vunpack.c.l.b16 %v359
          %v398 = vunpack.c.l.b16 %v360
          %v399 = vunpack.c.l.b16 %v361
          %v400 = vunpack.c.l.b16 %v362
          %v401 = vunpack.c.l.b16 %v363
          %v402 = vunpack.c.l.b16 %v364
          %v403 = vunpack.c.l.b16 %v365
          %v404 = vunpack.c.l.b16 %v366
          %v405 = vpack.c.b16 %v390, %v389
          %v406 = vpack.c.b16 %v392, %v391
          %v407 = vpack.c.b16 %v394, %v393
          %v408 = vpack.c.b16 %v396, %v395
          %v409 = vpack.c.b16 %v398, %v397
          %v410 = vpack.c.b16 %v400, %v399
          %v411 = vpack.c.b16 %v402, %v401
          %v412 = vpack.c.b16 %v404, %v403
          %v437 = vunpack.c.l.b16 %v330
          %v438 = vunpack.c.l.b16 %v331
          %v439 = vunpack.c.l.b16 %v332
          %v440 = vunpack.c.l.b16 %v333
          %v441 = vunpack.c.l.b16 %v334
          %v442 = vunpack.c.l.b16 %v335
          %v443 = vunpack.c.l.b16 %v336
          %v444 = vunpack.c.l.b16 %v337
          %v445 = vunpack.c.l.b16 %v338
          %v446 = vunpack.c.l.b16 %v339
          %v447 = vunpack.c.l.b16 %v340
          %v448 = vunpack.c.l.b16 %v341
          %v449 = vunpack.c.l.b16 %v342
          %v450 = vunpack.c.l.b16 %v343
          %v451 = vunpack.c.l.b16 %v344
          %v452 = vunpack.c.l.b16 %v345
          %v453 = vpack.c.b16 %v438, %v437
          %v454 = vpack.c.b16 %v440, %v439
          %v455 = vpack.c.b16 %v442, %v441
          %v456 = vpack.c.b16 %v444, %v443
          %v457 = vpack.c.b16 %v446, %v445
          %v458 = vpack.c.b16 %v448, %v447
          %v459 = vpack.c.b16 %v450, %v449
          %v460 = vpack.c.b16 %v452, %v451
          %469 = vmatprep.subr.bf16.mxu0 0
          %470 = vmatpush1.bf16.msra.mxu0 %v453
          %471 = vmatprep.subr.bf16.mxu0 0
          %472 = vmatpush1.bf16.msra.mxu0 %v454
          %473 = vmatprep.subr.bf16.mxu0 0
          %474 = vmatpush1.bf16.msra.mxu0 %v455
          %475 = vmatprep.subr.bf16.mxu0 0
          %476 = vmatpush1.bf16.msra.mxu0 %v456
          %477 = vmatprep.subr.bf16.mxu0 0
          %478 = vmatpush1.bf16.msra.mxu0 %v457
          %479 = vmatprep.subr.bf16.mxu0 0
          %480 = vmatpush1.bf16.msra.mxu0 %v458
          %481 = vmatprep.subr.bf16.mxu0 0
          %482 = vmatpush1.bf16.msra.mxu0 %v459
          %483 = vmatprep.subr.bf16.mxu0 0
          %484 = vmatpush1.bf16.msra.mxu0 %v460
          %485 = vmatprep.subr.bf16.mxu0 0
          %486 = vmatpush1.bf16.msra.mxu0 0
          %487 = vmatprep.subr.bf16.mxu0 0
          %488 = vmatpush1.bf16.msra.mxu0 0
          %489 = vmatprep.subr.bf16.mxu0 0
          %490 = vmatpush1.bf16.msra.mxu0 0
          %491 = vmatprep.subr.bf16.mxu0 0
          %492 = vmatpush1.bf16.msra.mxu0 0
          %493 = vmatprep.subr.bf16.mxu0 0
          %494 = vmatpush1.bf16.msra.mxu0 0
          %495 = vmatprep.subr.bf16.mxu0 0
          %496 = vmatpush1.bf16.msra.mxu0 0
          %497 = vmatprep.subr.bf16.mxu0 0
          %498 = vmatpush1.bf16.msra.mxu0 0
          %499 = vmatprep.subr.bf16.mxu0 0
          %500 = vmatpush1.bf16.msra.mxu0 0
          %501 = vmatprep.mubr.bf16.mxu0 0
          %502 = vmatmul.mubr.bf16.gmra.mrb[0].mxu0 %v405
          %v503 = vpop.f32.mrb[0].mxu0
          %v504 = vadd.f32 %v371, %v503
          %v505 = vpop.f32.mrb[0].mxu0
          %v506 = vpop.f32.mrb[0].mxu0
          %v507 = vadd.f32 %v371, %v506
          %v508 = vpop.f32.mrb[0].mxu0
          %509 = vmatprep.mubr.bf16.mxu0 0
          %510 = vmatmul.mubr.bf16.gmra.mrb[0].mxu0 %v406
          %v511 = vpop.f32.mrb[0].mxu0
          %v512 = vadd.f32 %v371, %v511
          %v513 = vpop.f32.mrb[0].mxu0
          %v514 = vpop.f32.mrb[0].mxu0
          %v515 = vadd.f32 %v371, %v514
          %v516 = vpop.f32.mrb[0].mxu0
          %517 = vmatprep.mubr.bf16.mxu0 0
          %518 = vmatmul.mubr.bf16.gmra.mrb[0].mxu0 %v407
          %v519 = vpop.f32.mrb[0].mxu0
          %v520 = vadd.f32 %v371, %v519
          %v521 = vpop.f32.mrb[0].mxu0
          %v522 = vpop.f32.mrb[0].mxu0
          %v523 = vadd.f32 %v371, %v522
          %v524 = vpop.f32.mrb[0].mxu0
          %525 = vmatprep.mubr.bf16.mxu0 0
          %526 = vmatmul.mubr.bf16.gmra.mrb[0].mxu0 %v408
          %v527 = vpop.f32.mrb[0].mxu0
          %v528 = vadd.f32 %v371, %v527
          %v529 = vpop.f32.mrb[0].mxu0
          %v530 = vpop.f32.mrb[0].mxu0
          %v531 = vadd.f32 %v371, %v530
          %v532 = vpop.f32.mrb[0].mxu0
          %533 = vmatprep.mubr.bf16.mxu0 0
          %534 = vmatmul.mubr.bf16.gmra.mrb[0].mxu0 %v409
          %v535 = vpop.f32.mrb[0].mxu0
          %v536 = vadd.f32 %v371, %v535
          %v537 = vpop.f32.mrb[0].mxu0
          %v538 = vpop.f32.mrb[0].mxu0
          %v539 = vadd.f32 %v371, %v538
          %v540 = vpop.f32.mrb[0].mxu0
          %541 = vmatprep.mubr.bf16.mxu0 0
          %542 = vmatmul.mubr.bf16.gmra.mrb[0].mxu0 %v410
          %v543 = vpop.f32.mrb[0].mxu0
          %v544 = vadd.f32 %v371, %v543
          %v545 = vpop.f32.mrb[0].mxu0
          %v546 = vpop.f32.mrb[0].mxu0
          %v547 = vadd.f32 %v371, %v546
          %v548 = vpop.f32.mrb[0].mxu0
          %549 = vmatprep.mubr.bf16.mxu0 0
          %550 = vmatmul.mubr.bf16.gmra.mrb[0].mxu0 %v411
          %v551 = vpop.f32.mrb[0].mxu0
          %v552 = vadd.f32 %v371, %v551
          %v553 = vpop.f32.mrb[0].mxu0
          %v554 = vpop.f32.mrb[0].mxu0
          %v555 = vadd.f32 %v371, %v554
          %v556 = vpop.f32.mrb[0].mxu0
          %557 = vmatprep.mubr.bf16.mxu0 0
          %558 = vmatmul.mubr.bf16.gmra.mrb[0].mxu0 %v412
          %v559 = vpop.f32.mrb[0].mxu0
          %v560 = vadd.f32 %v371, %v559
          %v561 = vpop.f32.mrb[0].mxu0
          %v562 = vpop.f32.mrb[0].mxu0
          %v563 = vadd.f32 %v371, %v562
          %v564 = vpop.f32.mrb[0].mxu0
          %565 = vdwg.mxu0
          %v566 = vmax.f32 %v504, 0.0
          %v567 = vmax.f32 %v507, 0.0
          %v568 = vmax.f32 %v512, 0.0
          %v569 = vmax.f32 %v515, 0.0
          %v570 = vmax.f32 %v520, 0.0
          %v571 = vmax.f32 %v523, 0.0
          %v572 = vmax.f32 %v528, 0.0
          %v573 = vmax.f32 %v531, 0.0
          %v574 = vmax.f32 %v536, 0.0
          %v575 = vmax.f32 %v539, 0.0
          %v576 = vmax.f32 %v544, 0.0
          %v577 = vmax.f32 %v547, 0.0
          %v578 = vmax.f32 %v552, 0.0
          %v579 = vmax.f32 %v555, 0.0
          %v580 = vmax.f32 %v560, 0.0
          %v581 = vmax.f32 %v563, 0.0
          %v582 = vpack.c.bf16 %v567, %v566
          %v583 = vpack.c.bf16 %v569, %v568
          %v584 = vpack.c.bf16 %v571, %v570
          %v585 = vpack.c.bf16 %v573, %v572
          %v586 = vpack.c.bf16 %v575, %v574
          %v587 = vpack.c.bf16 %v577, %v576
          %v588 = vpack.c.bf16 %v579, %v578
          %v589 = vpack.c.bf16 %v581, %v580
          %590 = vst [vmem:[#allocation2] sm:$0xff] %v582
          %591 = vst [vmem:[#allocation2 + $0x8] sm:$0xff] %v583
          %592 = vst [vmem:[#allocation2 + $0x10] sm:$0xff] %v584
          %593 = vst [vmem:[#allocation2 + $0x18] sm:$0xff] %v585
          %594 = vst [vmem:[#allocation2 + $0x20] sm:$0xff] %v586
          %595 = vst [vmem:[#allocation2 + $0x28] sm:$0xff] %v587
          %596 = vst [vmem:[#allocation2 + $0x30] sm:$0xff] %v588
          %597 = vst [vmem:[#allocation2 + $0x38] sm:$0xff] %v589
        $region56: #{tpu_custom_call.1} parent=39 // pred_fallthru
          _
        %v598 = vld [vmem:[%s280] sm:$0xf]
        %v599 = vld [vmem:[%s280 + $0x4] sm:$0xf]
        %v601 = vlaneseq
        %v602 = vshrl.u32 %v601, 7
        %v603 = vsub.s32 0, %v602
        %v604 = vrot.slane %v346, %v603
        %v608 = vunpack.c.l.b16 %v598
        %v609 = vunpack.c.l.b16 %v599
        %v610 = vpack.c.b16 %v609, %v608
        %v628 = vunpack.c.l.b16 %v330
        %v629 = vunpack.c.l.b16 %v331
        %v630 = vunpack.c.l.b16 %v332
        %v631 = vunpack.c.l.b16 %v333
        %v632 = vunpack.c.l.b16 %v334
        %v633 = vunpack.c.l.b16 %v335
        %v634 = vunpack.c.l.b16 %v336
        %v635 = vunpack.c.l.b16 %v337
        %v636 = vunpack.c.l.b16 %v338
        %v637 = vunpack.c.l.b16 %v339
        %v638 = vunpack.c.l.b16 %v340
        %v639 = vunpack.c.l.b16 %v341
        %v640 = vunpack.c.l.b16 %v342
        %v641 = vunpack.c.l.b16 %v343
        %v642 = vunpack.c.l.b16 %v344
        %v643 = vunpack.c.l.b16 %v345
        %v644 = vpack.c.b16 %v629, %v628
        %v645 = vpack.c.b16 %v631, %v630
        %v646 = vpack.c.b16 %v633, %v632
        %v647 = vpack.c.b16 %v635, %v634
        %v648 = vpack.c.b16 %v637, %v636
        %v649 = vpack.c.b16 %v639, %v638
        %v650 = vpack.c.b16 %v641, %v640
        %v651 = vpack.c.b16 %v643, %v642
        %660 = vmatprep.subr.bf16.mxu0 0
        %661 = vmatpush1.bf16.msra.mxu0 %v644
        %662 = vmatprep.subr.bf16.mxu0 0
        %663 = vmatpush1.bf16.msra.mxu0 %v645
        %664 = vmatprep.subr.bf16.mxu0 0
        %665 = vmatpush1.bf16.msra.mxu0 %v646
        %666 = vmatprep.subr.bf16.mxu0 0
        %667 = vmatpush1.bf16.msra.mxu0 %v647
        %668 = vmatprep.subr.bf16.mxu0 0
        %669 = vmatpush1.bf16.msra.mxu0 %v648
        %670 = vmatprep.subr.bf16.mxu0 0
        %671 = vmatpush1.bf16.msra.mxu0 %v649
        %672 = vmatprep.subr.bf16.mxu0 0
        %673 = vmatpush1.bf16.msra.mxu0 %v650
        %674 = vmatprep.subr.bf16.mxu0 0
        %675 = vmatpush1.bf16.msra.mxu0 %v651
        %676 = vmatprep.subr.bf16.mxu0 0
        %677 = vmatpush1.bf16.msra.mxu0 0
        %678 = vmatprep.subr.bf16.mxu0 0
        %679 = vmatpush1.bf16.msra.mxu0 0
        %680 = vmatprep.subr.bf16.mxu0 0
        %681 = vmatpush1.bf16.msra.mxu0 0
        %682 = vmatprep.subr.bf16.mxu0 0
        %683 = vmatpush1.bf16.msra.mxu0 0
        %684 = vmatprep.subr.bf16.mxu0 0
        %685 = vmatpush1.bf16.msra.mxu0 0
        %686 = vmatprep.subr.bf16.mxu0 0
        %687 = vmatpush1.bf16.msra.mxu0 0
        %688 = vmatprep.subr.bf16.mxu0 0
        %689 = vmatpush1.bf16.msra.mxu0 0
        %690 = vmatprep.subr.bf16.mxu0 0
        %691 = vmatpush1.bf16.msra.mxu0 0
        %692 = vmatprep.mubr.bf16.mxu0 0
        %693 = vmatmul.mubr.bf16.gmra.mrb[0].mxu0 %v610
        %v694 = vpop.f32.mrb[0].mxu0
        %v695 = vadd.f32 %v604, %v694
        %v696 = vpop.f32.mrb[0].mxu0
        %v697 = vpop.f32.mrb[0].mxu0
        %v698 = vadd.f32 %v604, %v697
        %v699 = vpop.f32.mrb[0].mxu0
        %700 = vdwg.mxu0
        %v701 = vmax.f32 %v695, 0.0
        %v702 = vmax.f32 %v698, 0.0
        %v703 = vpack.c.bf16 %v702, %v701
        %v704 = vld [vmem:[#allocation2] sm:$0xff]
        %v705 = vld [vmem:[#allocation2 + $0x8] sm:$0xff]
        %v706 = vld [vmem:[#allocation2 + $0x10] sm:$0xff]
        %v707 = vld [vmem:[#allocation2 + $0x18] sm:$0xff]
        %v708 = vld [vmem:[#allocation2 + $0x20] sm:$0xff]
        %v709 = vld [vmem:[#allocation2 + $0x28] sm:$0xff]
        %v710 = vld [vmem:[#allocation2 + $0x30] sm:$0xff]
        %v711 = vld [vmem:[#allocation2 + $0x38] sm:$0xff]
        %v712 = vld [vmem:[%s327] sm:$0x1]
        %v714 = vlaneseq
        %v715 = vshrl.u32 %v714, 7
        %v716 = vsub.s32 0, %v715
        %v717 = vrot.slane %v712, %v716
        %719 = vmatprep.subr.bf16.mxu0 0
        %720 = vmatpush1.bf16.xpose.msra.mxu0 %v704
        %721 = vmatprep.subr.bf16.mxu0 0
        %722 = vmatpush1.bf16.xpose.msra.mxu0 %v705
        %723 = vmatprep.subr.bf16.mxu0 0
        %724 = vmatpush1.bf16.xpose.msra.mxu0 %v706
        %725 = vmatprep.subr.bf16.mxu0 0
        %726 = vmatpush1.bf16.xpose.msra.mxu0 %v707
        %727 = vmatprep.subr.bf16.mxu0 0
        %728 = vmatpush1.bf16.xpose.msra.mxu0 %v708
        %729 = vmatprep.subr.bf16.mxu0 0
        %730 = vmatpush1.bf16.xpose.msra.mxu0 %v709
        %731 = vmatprep.subr.bf16.mxu0 0
        %732 = vmatpush1.bf16.xpose.msra.mxu0 %v710
        %733 = vmatprep.subr.bf16.mxu0 0
        %734 = vmatpush1.bf16.xpose.msra.mxu0 %v711
        %735 = vmatprep.subr.bf16.mxu0 0
        %736 = vmatpush1.bf16.xpose.msra.mxu0 0
        %737 = vmatprep.subr.bf16.mxu0 0
        %738 = vmatpush1.bf16.xpose.msra.mxu0 0
        %739 = vmatprep.subr.bf16.mxu0 0
        %740 = vmatpush1.bf16.xpose.msra.mxu0 0
        %741 = vmatprep.subr.bf16.mxu0 0
        %742 = vmatpush1.bf16.xpose.msra.mxu0 0
        %743 = vmatprep.subr.bf16.mxu0 0
        %744 = vmatpush1.bf16.xpose.msra.mxu0 0
        %745 = vmatprep.subr.bf16.mxu0 0
        %746 = vmatpush1.bf16.xpose.msra.mxu0 0
        %747 = vmatprep.subr.bf16.mxu0 0
        %748 = vmatpush1.bf16.xpose.msra.mxu0 0
        %749 = vmatprep.subr.bf16.mxu0 0
        %750 = vmatpush1.bf16.xpose.msra.mxu0 0
        %751 = vmatprep.mubr.bf16.mxu0 0
        %752 = vmatmul.mubr.bf16.gmra.mrb[0].mxu0 %v703
        %v753 = vpop.f32.mrb[0].mxu0
        %v754 = vadd.f32 %v717, %v753
        %v755 = vpop.f32.mrb[0].mxu0
        %v756 = vpop.f32.mrb[0].mxu0
        %v757 = vadd.f32 %v717, %v756
        %v758 = vpop.f32.mrb[0].mxu0
        %759 = vdwg.mxu0
        %760 = vmax.xlane.f32.xlu0 %v754
        %v761 = vpop.xlane.xlu0 %760
        %762 = vmax.xlane.f32.xlu0 %v757
        %v763 = vpop.xlane.xlu0 %762
        %v764 = vsub.f32 %v754, %v761
        %v765 = vsub.f32 %v757, %v763
        %v766 = vmul.f32 %v764, 1.442695
        %v767 = vpow.pop %v766
        %v768 = vmul.f32 %v765, 1.442695
        %v769 = vpow.pop %v768
        %770 = vadd.xlane.f32.xlu0 %v767
        %v771 = vpop.xlane.xlu0 %770
        %772 = vadd.xlane.f32.xlu0 %v769
        %v773 = vpop.xlane.xlu0 %772
        %v774 = vrcp.pop %v771
        %v775 = vrcp.pop %v773
        %v776 = vmul.f32 %v767, %v774
        %v777 = vmul.f32 %v769, %v775
        %v778 = vpack.c.bf16 %v777, %v776
        %v779 = vld [vmem:[%s289] sm:$0xf]
        %v780 = vld [vmem:[%s289 + $0x4] sm:$0xf]
        %v781 = vld [vmem:[%s289 + $0x8] sm:$0xf]
        %v782 = vld [vmem:[%s289 + $0xc] sm:$0xf]
        %v783 = vld [vmem:[%s289 + $0x10] sm:$0xf]
        %v784 = vld [vmem:[%s289 + $0x14] sm:$0xf]
        %v785 = vld [vmem:[%s289 + $0x18] sm:$0xf]
        %v786 = vld [vmem:[%s289 + $0x1c] sm:$0xf]
        %v787 = vld [vmem:[%s289 + $0x20] sm:$0xf]
        %v788 = vld [vmem:[%s289 + $0x24] sm:$0xf]
        %v789 = vld [vmem:[%s289 + $0x28] sm:$0xf]
        %v790 = vld [vmem:[%s289 + $0x2c] sm:$0xf]
        %v791 = vld [vmem:[%s289 + $0x30] sm:$0xf]
        %v792 = vld [vmem:[%s289 + $0x34] sm:$0xf]
        %v793 = vld [vmem:[%s289 + $0x38] sm:$0xf]
        %v794 = vld [vmem:[%s289 + $0x3c] sm:$0xf]
        %v811 = vunpack.c.l.b16 %v779
        %v812 = vunpack.c.l.b16 %v780
        %v813 = vunpack.c.l.b16 %v781
        %v814 = vunpack.c.l.b16 %v782
        %v815 = vunpack.c.l.b16 %v783
        %v816 = vunpack.c.l.b16 %v784
        %v817 = vunpack.c.l.b16 %v785
        %v818 = vunpack.c.l.b16 %v786
        %v819 = vunpack.c.l.b16 %v787
        %v820 = vunpack.c.l.b16 %v788
        %v821 = vunpack.c.l.b16 %v789
        %v822 = vunpack.c.l.b16 %v790
        %v823 = vunpack.c.l.b16 %v791
        %v824 = vunpack.c.l.b16 %v792
        %v825 = vunpack.c.l.b16 %v793
        %v826 = vunpack.c.l.b16 %v794
        %v827 = vpack.c.b16 %v812, %v811
        %v828 = vpack.c.b16 %v814, %v813
        %v829 = vpack.c.b16 %v816, %v815
        %v830 = vpack.c.b16 %v818, %v817
        %v831 = vpack.c.b16 %v820, %v819
        %v832 = vpack.c.b16 %v822, %v821
        %v833 = vpack.c.b16 %v824, %v823
        %v834 = vpack.c.b16 %v826, %v825
        %843 = vmatprep.subr.bf16.mxu0 0
        %844 = vmatpush1.bf16.msra.mxu0 %v827
        %845 = vmatprep.subr.bf16.mxu0 0
        %846 = vmatpush1.bf16.msra.mxu0 %v828
        %847 = vmatprep.subr.bf16.mxu0 0
        %848 = vmatpush1.bf16.msra.mxu0 %v829
        %849 = vmatprep.subr.bf16.mxu0 0
        %850 = vmatpush1.bf16.msra.mxu0 %v830
        %851 = vmatprep.subr.bf16.mxu0 0
        %852 = vmatpush1.bf16.msra.mxu0 %v831
        %853 = vmatprep.subr.bf16.mxu0 0
        %854 = vmatpush1.bf16.msra.mxu0 %v832
        %855 = vmatprep.subr.bf16.mxu0 0
        %856 = vmatpush1.bf16.msra.mxu0 %v833
        %857 = vmatprep.subr.bf16.mxu0 0
        %858 = vmatpush1.bf16.msra.mxu0 %v834
        %859 = vmatprep.subr.bf16.mxu0 0
        %860 = vmatpush1.bf16.msra.mxu0 0
        %861 = vmatprep.subr.bf16.mxu0 0
        %862 = vmatpush1.bf16.msra.mxu0 0
        %863 = vmatprep.subr.bf16.mxu0 0
        %864 = vmatpush1.bf16.msra.mxu0 0
        %865 = vmatprep.subr.bf16.mxu0 0
        %866 = vmatpush1.bf16.msra.mxu0 0
        %867 = vmatprep.subr.bf16.mxu0 0
        %868 = vmatpush1.bf16.msra.mxu0 0
        %869 = vmatprep.subr.bf16.mxu0 0
        %870 = vmatpush1.bf16.msra.mxu0 0
        %871 = vmatprep.subr.bf16.mxu0 0
        %872 = vmatpush1.bf16.msra.mxu0 0
        %873 = vmatprep.subr.bf16.mxu0 0
        %874 = vmatpush1.bf16.msra.mxu0 0
        %875 = vmatprep.mubr.bf16.mxu0 0
        %876 = vmatmul.mubr.bf16.gmra.mrb[0].mxu0 %v778
        %v877 = vpop.f32.mrb[0].mxu0
        %v878 = vadd.f32 0.0, %v877
        %v879 = vpop.f32.mrb[0].mxu0
        %v880 = vpop.f32.mrb[0].mxu0
        %v881 = vadd.f32 0.0, %v880
        %v882 = vpop.f32.mrb[0].mxu0
        %883 = vdwg.mxu0
        %884 = vst [vmem:[%s323] sm:$0xff] %v878
        %885 = vst [vmem:[%s323 + $0x8] sm:$0xff] %v881
        %s886 = sand.u32 %s167, 1
        %s887 = scalar_lea.sflag [#allocation5], %s886
        %s888 = sand.u32 %s167, 1
        %s889 = smul.addr %s888, 16
        %s890 = scalar_lea.vmem [#allocation9], %s889
        // Predicated region
        $region57: #{tpu_custom_call.1} parent=39 // pred_check
          %p891 = pneg %p177
        $region58: #{tpu_custom_call.1} parent=39 // pred_check_branch
          %893 = sbr.rel (%p891) target = $region60
        $region59: #{tpu_custom_call.1} parent=39 // pred_region
          %s894 = smul.u32 2, %s28
          %s896 = ssub.s32 256, 256
          %897 = vsyncadd %s887, %s896
          %s898 = smul.addr %s27, 2
          %s899 = sadd.s32 %s894, %s898
          %s900 = smul.addr %s899, 128
          %s901 = scalar_lea.hbm %s5, %s900
          %s902 = sshll.u32 %s890, 4
          %s903 = int_to_ptr.vmem [resolvable:$true] %s902
          %908 = dma.vmem_to_hbm [thread:$0]  %s903, 256, %s901, %s887, 128, 128, 8
        $region60: #{tpu_custom_call.1} parent=39 // pred_fallthru
          _
      $region40: #{tpu_custom_call.1} parent=5 // pred_fallthru
        _
      %p909 = scmp.le.s32.totalorder 2, %s18
      // Predicated region
      $region61: #{tpu_custom_call.1} parent=5 // pred_check
        %p910 = pneg %p909
      $region62: #{tpu_custom_call.1} parent=5 // pred_check_branch
        %912 = sbr.rel (%p910) target = $region64
      $region63: #{tpu_custom_call.1} parent=5 // pred_region
        %s913 = ssub.s32 %s18, 2
        // Predicated region
        $region65: #{tpu_custom_call.1} parent=63 // pred_check
          %p914 = pneg %p183
        $region66: #{tpu_custom_call.1} parent=63 // pred_check_branch
          %916 = sbr.rel (%p914) target = $region68
        $region67: #{tpu_custom_call.1} parent=63 // pred_region
          %s917 = sand.u32 %s168, 1
          %s918 = scalar_lea.sflag [#allocation5], %s917
          %s919 = sand.u32 %s168, 1
          %s920 = smul.addr %s919, 16
          %s921 = scalar_lea.vmem [#allocation9], %s920
          %922 = dma.done %s918, 256
        $region68: #{tpu_custom_call.1} parent=63 // pred_fallthru
          _
      $region64: #{tpu_custom_call.1} parent=5 // pred_fallthru
        _
    $region6: #{tpu_custom_call.1} parent=1 // loop_footer
      %s22 = sadd.s32 1, %s18
    $region7: #{tpu_custom_call.1} parent=1 // loop_footer_branch
      %17 = sbr.rel target = $region3
    $region8: #{tpu_custom_call.1} parent=1 // loop_exit
      _
    %923 = vsyncpa [#allocation4], 1
    %s924 = scalar_lea.sflag [#allocation4], 1
    %925 = vsyncpa %s924, 1
    %926 = vsyncpa [#allocation7], 1
    %s927 = scalar_lea.sflag [#allocation7], 1
    %928 = vsyncpa %s927, 1
    %929 = vsyncpa [#allocation5], 1
    %s930 = scalar_lea.sflag [#allocation5], 1
    %931 = vsyncpa %s930, 1

</llo_original>
